<compile_context>
chip_gen: v5e
topology: v5e:2x2
jax: 0.10.0
libtpu: 0.0.40
codegen_flags: <defaults>
</compile_context>

<pallas_src>
import jax
import jax.numpy as jnp
from jax.experimental import pallas as pl
from jax.experimental.pallas import tpu as pltpu


def _round_up(n, m):
    return ((n + m - 1) // m) * m


def clip_finetuner_kernel(x_ref, wenc_ref, wcls_ref, b_ref, out_ref, acc_ref):
    k = pl.program_id(1)

    @pl.when(k == 0)
    def _():
        acc_ref[...] = jnp.zeros_like(acc_ref)

    # Frozen "encode_image" partial product: bf16 x bf16 on the MXU, f32 acc.
    # x arrives already in bf16 (cast fused into the wrapper-side pad).
    acc_ref[...] += jnp.dot(
        x_ref[...],
        wenc_ref[...],
        preferred_element_type=jnp.float32,
    )

    @pl.when(k == pl.num_programs(1) - 1)
    def _():
        # f32 accumulator == features.float().  Head matmul stays in f32 for
        # parity with nn.Linear on f32 features (tiny contraction, runs once
        # per M tile, cost is negligible).
        feats = acc_ref[...]
        logits = jnp.dot(
            feats,
            wcls_ref[...],
            preferred_element_type=jnp.float32,
        )
        # Lane-dense (128-padded) output slab; single broadcast bias add.
        out_ref[...] = logits + b_ref[...]


def clip_finetuner_forward(x_nchw, w_enc, w_cls, b_cls, *,
                           tm_target=512, tk_target=4096):
    """x_nchw: [B, C, H, W] f32; w_enc: [C*H*W, D] bf16 (frozen encoder stand-in);
    w_cls: [D, num_classes] f32; b_cls: [num_classes] f32.
    Returns logits [B, num_classes] f32."""
    B = x_nchw.shape[0]
    d_in = x_nchw.shape[1] * x_nchw.shape[2] * x_nchw.shape[3]
    d_out = w_enc.shape[1]
    num_classes = w_cls.shape[1]

    # --- tiling / padding (lane = 128; bf16 sublane tile = 16) ---
    b16 = _round_up(B, 16)
    # Large tm => w_enc streamed once per 512 batch rows (once total if
    # B <= 512).  For B >= 2*tm_target the "parallel" M axis has >= 2 tiles,
    # which lets v7x's second TensorCore participate.
    tm = tm_target if b16 >= tm_target else b16
    b_pad = _round_up(B, tm)
    tk = min(tk_target, _round_up(d_in, 128))
    d_in_pad = _round_up(d_in, tk)
    d_out_pad = _round_up(d_out, 128)
    nc_pad = _round_up(num_classes, 128)

    # x: fused reshape + bf16 cast + pad in the wrapper, so the kernel reads x
    # from HBM exactly once at 2 B/elem.
    x_flat = x_nchw.reshape(B, d_in).astype(jnp.bfloat16)
    if (b_pad, d_in_pad) != (B, d_in):
        x_flat = jnp.pad(x_flat, ((0, b_pad - B), (0, d_in_pad - d_in)))

    w_enc_p = w_enc.astype(jnp.bfloat16)
    if (d_in_pad, d_out_pad) != w_enc.shape:
        w_enc_p = jnp.pad(w_enc_p,
                          ((0, d_in_pad - d_in), (0, d_out_pad - d_out)))

    # Head weight stays f32 end-to-end (parity with the PyTorch classifier).
    w_cls_p = w_cls.astype(jnp.float32)
    if (d_out_pad, nc_pad) != w_cls.shape:
        w_cls_p = jnp.pad(w_cls_p,
                          ((0, d_out_pad - d_out), (0, nc_pad - num_classes)))

    b_p = jnp.pad(b_cls.astype(jnp.float32),
                  (0, nc_pad - num_classes)).reshape(1, nc_pad)

    grid = (b_pad // tm, d_in_pad // tk)

    # VMEM budget for the double-buffered pipelined blocks + scratch, with a
    # small margin.  At the default tm=512 / tk=4096 / d_out=768 this is
    # ~24 MiB, comfortably inside v7x's 64 MiB per-TC VMEM (and trivially
    # inside v5e/v6e's 128 MiB).
    vmem_bytes = (2 * tm * tk * 2                 # x tiles (bf16, 2 bufs)
                  + 2 * tk * d_out_pad * 2        # w_enc tiles (bf16, 2 bufs)
                  + 2 * d_out_pad * nc_pad * 4    # w_cls (resident, 2 bufs)
                  + 2 * 8 * nc_pad * 4            # bias row (padded sublane)
                  + 2 * tm * nc_pad * 4           # output tiles (2 bufs)
                  + tm * d_out_pad * 4)           # f32 accumulator scratch
    vmem_limit = int(min(max(vmem_bytes + (4 << 20), 32 << 20), 64 << 20))

    flops = 2 * b_pad * d_in_pad * d_out_pad + 2 * b_pad * d_out_pad * nc_pad
    bytes_accessed = (b_pad * d_in_pad * 2                       # x (bf16)
                      + (b_pad // tm) * d_in_pad * d_out_pad * 2  # w_enc streams
                      + d_out_pad * nc_pad * 4                   # w_cls
                      + b_pad * nc_pad * 4)                      # logits out

    out_padded = pl.pallas_call(
        clip_finetuner_kernel,
        out_shape=jax.ShapeDtypeStruct((b_pad, nc_pad), jnp.float32),
        grid_spec=pltpu.PrefetchScalarGridSpec(
            num_scalar_prefetch=0,
            grid=grid,
            in_specs=[
                # x tile: [tm, tk] bf16
                pl.BlockSpec((tm, tk), lambda i, k: (i, k)),
                # frozen encoder weight tile: [tk, d_out_pad] bf16
                pl.BlockSpec((tk, d_out_pad), lambda i, k: (k, 0)),
                # classifier weight: resident full block, f32
                pl.BlockSpec((d_out_pad, nc_pad), lambda i, k: (0, 0)),
                # bias, padded to (1, 128*n), resident
                pl.BlockSpec((1, nc_pad), lambda i, k: (0, 0)),
            ],
            out_specs=pl.BlockSpec((tm, nc_pad), lambda i, k: (i, 0)),
            scratch_shapes=[pltpu.VMEM((tm, d_out_pad), jnp.float32)],
        ),
        compiler_params=pltpu.CompilerParams(
            dimension_semantics=("parallel", "arbitrary"),
            vmem_limit_bytes=vmem_limit),
        cost_estimate=pl.CostEstimate(
            flops=flops, transcendentals=0, bytes_accessed=bytes_accessed),
    )(x_flat, w_enc_p, w_cls_p, b_p)

    return out_padded[:B, :num_classes]


if __name__ == "__main__":
    # Small, CLIP-like shapes: batch=2, 3-channel 16x16 images,
    # visual.output_dim=32, num_classes=8.
    B, C, H, W = 2, 3, 16, 16
    output_dim = 32
    num_classes = 8
    d_in = C * H * W

    key = jax.random.PRNGKey(0)
    kx, kenc, kcls, kb = jax.random.split(key, 4)

    x = jax.random.normal(kx, (B, C, H, W), dtype=jnp.float32)
    # Frozen encoder stand-in weights (bf16, like a half-precision CLIP tower).
    w_enc = (jax.random.normal(kenc, (d_in, output_dim), dtype=jnp.float32)
             * 0.02).astype(jnp.bfloat16)
    # Classifier head: nn.Linear(output_dim, num_classes), stored as
    # [output_dim, num_classes] (transpose of torch's [out, in] weight).
    w_cls = jax.random.normal(kcls, (output_dim, num_classes),
                              dtype=jnp.float32) * 0.1
    b_cls = jax.random.normal(kb, (num_classes,), dtype=jnp.float32) * 0.1

    logits = clip_finetuner_forward(x, w_enc, w_cls, b_cls)
    jax.block_until_ready(logits)

    # Reference mirroring the kernel's dtype flow (bf16 encoder, f32 head).
    x_flat = x.reshape(B, d_in).astype(jnp.bfloat16)
    feats_ref = jnp.dot(x_flat, w_enc, preferred_element_type=jnp.float32)
    logits_ref = jnp.dot(feats_ref, w_cls,
                         preferred_element_type=jnp.float32) + b_cls[None, :]

    assert logits.shape == (B, num_classes)
    assert logits.dtype == jnp.float32
    assert bool(jnp.allclose(logits, logits_ref, atol=2e-2, rtol=2e-2)), (
        "kernel output mismatch vs reference")
    print("KERNEL_OK")
</pallas_src>

<mosaic_0001>
module attributes {stable_mosaic.version = 11 : i64} {
  func.func @clip_finetuner_kernel(%arg0: i32, %arg1: i32, %arg2: memref<16x768xbf16, #tpu.memory_space<vmem>>, %arg3: memref<768x128xbf16, #tpu.memory_space<vmem>>, %arg4: memref<128x128xf32, #tpu.memory_space<vmem>>, %arg5: memref<1x128xf32, #tpu.memory_space<vmem>>, %arg6: memref<16x128xf32, #tpu.memory_space<vmem>>, %arg7: memref<16x128xf32, #tpu.memory_space<vmem>>) attributes {dimension_semantics = [#tpu.dimension_semantics<parallel>, #tpu.dimension_semantics<arbitrary>], iteration_bounds = array<i64: 1, 1>, scalar_prefetch = 0 : i64, scratch_operands = 1 : i64, tpu.core_type = #tpu.core_type<tc>, window_params = [{transform_indices = @transform_0, window_bounds = array<i64: 16, 768>}, {transform_indices = @transform_1, window_bounds = array<i64: 768, 128>}, {pipeline_mode = #tpu.pipeline_mode<synchronous>, transform_indices = @transform_2, window_bounds = array<i64: 128, 128>}, {pipeline_mode = #tpu.pipeline_mode<synchronous>, transform_indices = @transform_3, window_bounds = array<i64: 1, 128>}, {transform_indices = @transform_4, window_bounds = array<i64: 16, 128>}]} {
    %c0_i32 = arith.constant 0 : i32
    %0 = arith.cmpi eq, %arg1, %c0_i32 : i32
    %1 = arith.extui %0 : i1 to i32
    %c0_i32_0 = arith.constant 0 : i32
    %2 = arith.cmpi ne, %1, %c0_i32_0 : i32
    scf.if %2 {
      %cst_10 = arith.constant 0.000000e+00 : f32
      %12 = vector.broadcast %cst_10 : f32 to vector<16x128xf32>
      %c0_11 = arith.constant 0 : index
      %c0_12 = arith.constant 0 : index
      %13 = vector.load %arg7[%c0_11, %c0_12] : memref<16x128xf32, #tpu.memory_space<vmem>>, vector<16x128xf32>
      tpu.vector_store %arg7[%c0_11, %c0_12], %12 {strides = array<i32>} : memref<16x128xf32, #tpu.memory_space<vmem>>, vector<16x128xf32>,
    } else {
    }
    %c0 = arith.constant 0 : index
    %c0_1 = arith.constant 0 : index
    %3 = vector.load %arg7[%c0, %c0_1] : memref<16x128xf32, #tpu.memory_space<vmem>>, vector<16x128xf32>
    %c0_2 = arith.constant 0 : index
    %c0_3 = arith.constant 0 : index
    %4 = vector.load %arg2[%c0_2, %c0_3] : memref<16x768xbf16, #tpu.memory_space<vmem>>, vector<16x768xbf16>
    %c0_4 = arith.constant 0 : index
    %c0_5 = arith.constant 0 : index
    %5 = vector.load %arg3[%c0_4, %c0_5] : memref<768x128xbf16, #tpu.memory_space<vmem>>, vector<768x128xbf16>
    %cst = arith.constant dense<0.000000e+00> : vector<16x128xf32>
    %6 = tpu.matmul %4, %5, %cst {dimension_numbers = #tpu.dot_dimension_numbers<[1], [0], [0], [1], [0, 0, 1, 1], [], []>} : vector<16x768xbf16>, vector<768x128xbf16>, vector<16x128xf32> -> vector<16x128xf32>
    %7 = arith.addf %3, %6 : vector<16x128xf32>
    %c0_6 = arith.constant 0 : index
    %c0_7 = arith.constant 0 : index
    %8 = vector.load %arg7[%c0_6, %c0_7] : memref<16x128xf32, #tpu.memory_space<vmem>>, vector<16x128xf32>
    tpu.vector_store %arg7[%c0_6, %c0_7], %7 {strides = array<i32>} : memref<16x128xf32, #tpu.memory_space<vmem>>, vector<16x128xf32>,
    %c0_i32_8 = arith.constant 0 : i32
    %9 = arith.cmpi eq, %arg1, %c0_i32_8 : i32
    %10 = arith.extui %9 : i1 to i32
    %c0_i32_9 = arith.constant 0 : i32
    %11 = arith.cmpi ne, %10, %c0_i32_9 : i32
    scf.if %11 {
      %c0_10 = arith.constant 0 : index
      %c0_11 = arith.constant 0 : index
      %12 = vector.load %arg7[%c0_10, %c0_11] : memref<16x128xf32, #tpu.memory_space<vmem>>, vector<16x128xf32>
      %c0_12 = arith.constant 0 : index
      %c0_13 = arith.constant 0 : index
      %13 = vector.load %arg4[%c0_12, %c0_13] : memref<128x128xf32, #tpu.memory_space<vmem>>, vector<128x128xf32>
      %cst_14 = arith.constant dense<0.000000e+00> : vector<16x128xf32>
      %14 = tpu.matmul %12, %13, %cst_14 {dimension_numbers = #tpu.dot_dimension_numbers<[1], [0], [0], [1], [0, 0, 1, 1], [], []>} : vector<16x128xf32>, vector<128x128xf32>, vector<16x128xf32> -> vector<16x128xf32>
      %c0_15 = arith.constant 0 : index
      %c0_16 = arith.constant 0 : index
      %15 = vector.load %arg5[%c0_15, %c0_16] : memref<1x128xf32, #tpu.memory_space<vmem>>, vector<1x128xf32>
      %16 = vector.broadcast %15 : vector<1x128xf32> to vector<16x128xf32>
      %17 = arith.addf %14, %16 : vector<16x128xf32>
      %c0_17 = arith.constant 0 : index
      %c0_18 = arith.constant 0 : index
      %18 = vector.load %arg6[%c0_17, %c0_18] : memref<16x128xf32, #tpu.memory_space<vmem>>, vector<16x128xf32>
      tpu.vector_store %arg6[%c0_17, %c0_18], %17 {strides = array<i32>} : memref<16x128xf32, #tpu.memory_space<vmem>>, vector<16x128xf32>,
    } else {
    }
    return
  }
  func.func @transform_0(%arg0: i32, %arg1: i32) -> (i32, i32) {
    %c0_i32 = arith.constant 0 : i32
    return %arg0, %arg1 : i32, i32
  }
  func.func @transform_1(%arg0: i32, %arg1: i32) -> (i32, i32) {
    %c0_i32 = arith.constant 0 : i32
    %c0_i32_0 = arith.constant 0 : i32
    return %arg1, %c0_i32 : i32, i32
  }
  func.func @transform_2(%arg0: i32, %arg1: i32) -> (i32, i32) {
    %c0_i32 = arith.constant 0 : i32
    %c0_i32_0 = arith.constant 0 : i32
    %c0_i32_1 = arith.constant 0 : i32
    return %c0_i32, %c0_i32_0 : i32, i32
  }
  func.func @transform_3(%arg0: i32, %arg1: i32) -> (i32, i32) {
    %c0_i32 = arith.constant 0 : i32
    %c0_i32_0 = arith.constant 0 : i32
    %c0_i32_1 = arith.constant 0 : i32
    return %c0_i32, %c0_i32_0 : i32, i32
  }
  func.func @transform_4(%arg0: i32, %arg1: i32) -> (i32, i32) {
    %c0_i32 = arith.constant 0 : i32
    %c0_i32_0 = arith.constant 0 : i32
    return %arg0, %c0_i32 : i32, i32
  }
}

</mosaic_0001>

<llo_original>
// kernel: tpu_custom_call.1
$region0: #{tpu_custom_call.1}
  #allocation0 [shape = 'u32[]', space=smem, size = 0x4, offset = 0x4, fixed_abs, tag = 'smem constant byte address 0x4 - core index']
  #allocation1 [shape = 'u32[72,128]{1,0:T(1,128)}', space=vmem, size = 0x9000, scoped, tag = 'internal scratch']
  #allocation2 [shape = 'f32[16,128]{1,0:T(8,128)}', space=vmem, size = 0x2000, scoped, tag = 'scratch operand']
  %s0 = inlined_call_operand.hbm [shape: bf16[16,768], index: 0, kind: input, shape index: {}]
  %s1 = inlined_call_operand.hbm [shape: bf16[768,128], index: 1, kind: input, shape index: {}]
  %s2 = inlined_call_operand.hbm [shape: f32[128,128], index: 2, kind: input, shape index: {}]
  %s3 = inlined_call_operand.vmem [shape: f32[1,128], index: 3, kind: input, shape index: {}]
  %s4 = inlined_call_operand.hbm [shape: f32[16,128], index: 4, kind: output, shape index: {}]
  %s5 = sld [smem:[#allocation0]]
  $region46: #{tpu_custom_call.1} parent=0
    _
  %s7 = ssub.s32 1, %s5
  %s8 = scalar_select 0, %s7, %s5
  $region1: #{tpu_custom_call.1} parent=0
    #allocation3 [shape = 'u8[24576]{0}', space=vmem, size = 0x6000, scoped, tag = 'input window, operand 0, single buffered']
    #allocation4 [shape = 's32[1]{0}', space=sflag, size = 0x4, scoped, tag = 'scoped memory for tpu_custom_call.1']
    #allocation5 [shape = 's32[1]{0}', space=sflag, size = 0x4, scoped, tag = 'scoped memory for tpu_custom_call.1']
    #allocation6 [shape = 'u8[196608]{0}', space=vmem, size = 0x30000, scoped, tag = 'input window, operand 1, single buffered']
    #allocation7 [shape = 's32[1]{0}', space=sflag, size = 0x4, scoped, tag = 'scoped memory for tpu_custom_call.1']
    #allocation8 [shape = 'u8[65536]{0}', space=vmem, size = 0x10000, scoped, tag = 'input window, operand 2, single buffered']
    #allocation9 [shape = 'u8[8192]{0}', space=vmem, size = 0x2000, scoped, tag = 'output window, operand 0, single buffered']
    %9 = vsyncpa [#allocation4], 0
    %10 = vsyncpa [#allocation7], 0
    %11 = vsyncpa [#allocation5], 0
    // Predicated region
    $region2: #{tpu_custom_call.1} parent=1 // pred_check
      _
    $region3: #{tpu_custom_call.1} parent=1 // pred_check_branch
      %13 = sbr.rel (0) target = $region5
    $region4: #{tpu_custom_call.1} parent=1 // pred_region
      %15 = vsyncadd [#allocation4], 0
      %s16 = sshll.u32 %s0, 4
      %s17 = int_to_ptr.hbm [resolvable:$true] %s16
      %s18 = sshll.u32 [#allocation3], 4
      %s19 = int_to_ptr.vmem [resolvable:$true] %s18
      %24 = dma.hbm_to_vmem [thread:$0]  %s17, 768, %s19, [#allocation4], 384, 384, 24
    $region5: #{tpu_custom_call.1} parent=1 // pred_fallthru
      _
    // Predicated region
    $region6: #{tpu_custom_call.1} parent=1 // pred_check
      _
    $region7: #{tpu_custom_call.1} parent=1 // pred_check_branch
      %26 = sbr.rel (0) target = $region9
    $region8: #{tpu_custom_call.1} parent=1 // pred_region
      %28 = vsyncadd [#allocation7], 0
      %s29 = sshll.u32 %s1, 4
      %s30 = int_to_ptr.hbm [resolvable:$true] %s29
      %s31 = sshll.u32 [#allocation6], 4
      %s32 = int_to_ptr.vmem [resolvable:$true] %s31
      %37 = dma.hbm_to_vmem [thread:$0]  %s30, 6144, %s32, [#allocation7], 64, 64, 4
    $region9: #{tpu_custom_call.1} parent=1 // pred_fallthru
      _
    // Predicated region
    $region10: #{tpu_custom_call.1} parent=1 // pred_check
      _
    $region11: #{tpu_custom_call.1} parent=1 // pred_check_branch
      %39 = sbr.rel (0) target = $region13
    $region12: #{tpu_custom_call.1} parent=1 // pred_region
      %41 = vsyncadd [#allocation7], 0
      %s42 = sshll.u32 %s2, 4
      %s43 = int_to_ptr.hbm [resolvable:$true] %s42
      %s44 = sshll.u32 [#allocation8], 4
      %s45 = int_to_ptr.vmem [resolvable:$true] %s44
      %50 = dma.hbm_to_vmem [thread:$0]  %s43, 2048, %s45, [#allocation7], 128, 128, 8
    $region13: #{tpu_custom_call.1} parent=1 // pred_fallthru
      _
    // Predicated region
    $region14: #{tpu_custom_call.1} parent=1 // pred_check
      _
    $region15: #{tpu_custom_call.1} parent=1 // pred_check_branch
      %52 = sbr.rel (0) target = $region17
    $region16: #{tpu_custom_call.1} parent=1 // pred_region
      _
    $region17: #{tpu_custom_call.1} parent=1 // pred_fallthru
      _
    // Predicated region
    $region18: #{tpu_custom_call.1} parent=1 // pred_check
      _
    $region19: #{tpu_custom_call.1} parent=1 // pred_check_branch
      %54 = sbr.rel (0) target = $region21
    $region20: #{tpu_custom_call.1} parent=1 // pred_region
      %56 = dma.done [#allocation4], 768
    $region21: #{tpu_custom_call.1} parent=1 // pred_fallthru
      _
    // Predicated region
    $region22: #{tpu_custom_call.1} parent=1 // pred_check
      _
    $region23: #{tpu_custom_call.1} parent=1 // pred_check_branch
      %58 = sbr.rel (0) target = $region25
    $region24: #{tpu_custom_call.1} parent=1 // pred_region
      %60 = dma.done [#allocation7], 6144
    $region25: #{tpu_custom_call.1} parent=1 // pred_fallthru
      _
    // Predicated region
    $region26: #{tpu_custom_call.1} parent=1 // pred_check
      _
    $region27: #{tpu_custom_call.1} parent=1 // pred_check_branch
      %62 = sbr.rel (0) target = $region29
    $region28: #{tpu_custom_call.1} parent=1 // pred_region
      %64 = dma.done [#allocation7], 2048
    $region29: #{tpu_custom_call.1} parent=1 // pred_fallthru
      _
    %p65 = scmp.eq.s32.totalorder 0, 0
    // Predicated region
    $region30: #{tpu_custom_call.1} parent=1 // pred_check
      %p66 = pneg %p65
    $region31: #{tpu_custom_call.1} parent=1 // pred_check_branch
      %68 = sbr.rel (%p66) target = $region33
    $region32: #{tpu_custom_call.1} parent=1 // pred_region
      %69 = vst [vmem:[#allocation2] sm:$0xff] 0.0
      %70 = vst [vmem:[#allocation2 + $0x8] sm:$0xff] 0.0
    $region33: #{tpu_custom_call.1} parent=1 // pred_fallthru
      _
    %v71 = vld [vmem:[#allocation2] sm:$0xff]
    %v72 = vld [vmem:[#allocation2 + $0x8] sm:$0xff]
    %v73 = vld [vmem:[#allocation3] sm:$0xff]
    %v74 = vld [vmem:[#allocation3 + $0x8] sm:$0xff]
    %v75 = vld [vmem:[#allocation3 + $0x10] sm:$0xff]
    %v76 = vld [vmem:[#allocation3 + $0x18] sm:$0xff]
    %v77 = vld [vmem:[#allocation3 + $0x20] sm:$0xff]
    %v78 = vld [vmem:[#allocation3 + $0x28] sm:$0xff]
    %v79 = vld [vmem:[#allocation6] sm:$0xf]
    %v80 = vld [vmem:[#allocation6 + $0x4] sm:$0xf]
    %v81 = vld [vmem:[#allocation6 + $0x8] sm:$0xf]
    %v82 = vld [vmem:[#allocation6 + $0xc] sm:$0xf]
    %v83 = vld [vmem:[#allocation6 + $0x10] sm:$0xf]
    %v84 = vld [vmem:[#allocation6 + $0x14] sm:$0xf]
    %v85 = vld [vmem:[#allocation6 + $0x18] sm:$0xf]
    %v86 = vld [vmem:[#allocation6 + $0x1c] sm:$0xf]
    %v87 = vld [vmem:[#allocation6 + $0x20] sm:$0xf]
    %v88 = vld [vmem:[#allocation6 + $0x24] sm:$0xf]
    %v89 = vld [vmem:[#allocation6 + $0x28] sm:$0xf]
    %v90 = vld [vmem:[#allocation6 + $0x2c] sm:$0xf]
    %v91 = vld [vmem:[#allocation6 + $0x30] sm:$0xf]
    %v92 = vld [vmem:[#allocation6 + $0x34] sm:$0xf]
    %v93 = vld [vmem:[#allocation6 + $0x38] sm:$0xf]
    %v94 = vld [vmem:[#allocation6 + $0x3c] sm:$0xf]
    %v95 = vld [vmem:[#allocation6 + $0x40] sm:$0xf]
    %v96 = vld [vmem:[#allocation6 + $0x44] sm:$0xf]
    %v97 = vld [vmem:[#allocation6 + $0x48] sm:$0xf]
    %v98 = vld [vmem:[#allocation6 + $0x4c] sm:$0xf]
    %v99 = vld [vmem:[#allocation6 + $0x50] sm:$0xf]
    %v100 = vld [vmem:[#allocation6 + $0x54] sm:$0xf]
    %v101 = vld [vmem:[#allocation6 + $0x58] sm:$0xf]
    %v102 = vld [vmem:[#allocation6 + $0x5c] sm:$0xf]
    %v103 = vld [vmem:[#allocation6 + $0x60] sm:$0xf]
    %v104 = vld [vmem:[#allocation6 + $0x64] sm:$0xf]
    %v105 = vld [vmem:[#allocation6 + $0x68] sm:$0xf]
    %v106 = vld [vmem:[#allocation6 + $0x6c] sm:$0xf]
    %v107 = vld [vmem:[#allocation6 + $0x70] sm:$0xf]
    %v108 = vld [vmem:[#allocation6 + $0x74] sm:$0xf]
    %v109 = vld [vmem:[#allocation6 + $0x78] sm:$0xf]
    %v110 = vld [vmem:[#allocation6 + $0x7c] sm:$0xf]
    %v111 = vld [vmem:[#allocation6 + $0x80] sm:$0xf]
    %v112 = vld [vmem:[#allocation6 + $0x84] sm:$0xf]
    %v113 = vld [vmem:[#allocation6 + $0x88] sm:$0xf]
    %v114 = vld [vmem:[#allocation6 + $0x8c] sm:$0xf]
    %v115 = vld [vmem:[#allocation6 + $0x90] sm:$0xf]
    %v116 = vld [vmem:[#allocation6 + $0x94] sm:$0xf]
    %v117 = vld [vmem:[#allocation6 + $0x98] sm:$0xf]
    %v118 = vld [vmem:[#allocation6 + $0x9c] sm:$0xf]
    %v119 = vld [vmem:[#allocation6 + $0xa0] sm:$0xf]
    %v120 = vld [vmem:[#allocation6 + $0xa4] sm:$0xf]
    %v121 = vld [vmem:[#allocation6 + $0xa8] sm:$0xf]
    %v122 = vld [vmem:[#allocation6 + $0xac] sm:$0xf]
    %v123 = vld [vmem:[#allocation6 + $0xb0] sm:$0xf]
    %v124 = vld [vmem:[#allocation6 + $0xb4] sm:$0xf]
    %v125 = vld [vmem:[#allocation6 + $0xb8] sm:$0xf]
    %v126 = vld [vmem:[#allocation6 + $0xbc] sm:$0xf]
    %v127 = vld [vmem:[#allocation6 + $0xc0] sm:$0xf]
    %v128 = vld [vmem:[#allocation6 + $0xc4] sm:$0xf]
    %v129 = vld [vmem:[#allocation6 + $0xc8] sm:$0xf]
    %v130 = vld [vmem:[#allocation6 + $0xcc] sm:$0xf]
    %v131 = vld [vmem:[#allocation6 + $0xd0] sm:$0xf]
    %v132 = vld [vmem:[#allocation6 + $0xd4] sm:$0xf]
    %v133 = vld [vmem:[#allocation6 + $0xd8] sm:$0xf]
    %v134 = vld [vmem:[#allocation6 + $0xdc] sm:$0xf]
    %v135 = vld [vmem:[#allocation6 + $0xe0] sm:$0xf]
    %v136 = vld [vmem:[#allocation6 + $0xe4] sm:$0xf]
    %v137 = vld [vmem:[#allocation6 + $0xe8] sm:$0xf]
    %v138 = vld [vmem:[#allocation6 + $0xec] sm:$0xf]
    %v139 = vld [vmem:[#allocation6 + $0xf0] sm:$0xf]
    %v140 = vld [vmem:[#allocation6 + $0xf4] sm:$0xf]
    %v141 = vld [vmem:[#allocation6 + $0xf8] sm:$0xf]
    %v142 = vld [vmem:[#allocation6 + $0xfc] sm:$0xf]
    %v143 = vld [vmem:[#allocation6 + $0x100] sm:$0xf]
    %v144 = vld [vmem:[#allocation6 + $0x104] sm:$0xf]
    %v145 = vld [vmem:[#allocation6 + $0x108] sm:$0xf]
    %v146 = vld [vmem:[#allocation6 + $0x10c] sm:$0xf]
    %v147 = vld [vmem:[#allocation6 + $0x110] sm:$0xf]
    %v148 = vld [vmem:[#allocation6 + $0x114] sm:$0xf]
    %v149 = vld [vmem:[#allocation6 + $0x118] sm:$0xf]
    %v150 = vld [vmem:[#allocation6 + $0x11c] sm:$0xf]
    %v151 = vld [vmem:[#allocation6 + $0x120] sm:$0xf]
    %v152 = vld [vmem:[#allocation6 + $0x124] sm:$0xf]
    %v153 = vld [vmem:[#allocation6 + $0x128] sm:$0xf]
    %v154 = vld [vmem:[#allocation6 + $0x12c] sm:$0xf]
    %v155 = vld [vmem:[#allocation6 + $0x130] sm:$0xf]
    %v156 = vld [vmem:[#allocation6 + $0x134] sm:$0xf]
    %v157 = vld [vmem:[#allocation6 + $0x138] sm:$0xf]
    %v158 = vld [vmem:[#allocation6 + $0x13c] sm:$0xf]
    %v159 = vld [vmem:[#allocation6 + $0x140] sm:$0xf]
    %v160 = vld [vmem:[#allocation6 + $0x144] sm:$0xf]
    %v161 = vld [vmem:[#allocation6 + $0x148] sm:$0xf]
    %v162 = vld [vmem:[#allocation6 + $0x14c] sm:$0xf]
    %v163 = vld [vmem:[#allocation6 + $0x150] sm:$0xf]
    %v164 = vld [vmem:[#allocation6 + $0x154] sm:$0xf]
    %v165 = vld [vmem:[#allocation6 + $0x158] sm:$0xf]
    %v166 = vld [vmem:[#allocation6 + $0x15c] sm:$0xf]
    %v167 = vld [vmem:[#allocation6 + $0x160] sm:$0xf]
    %v168 = vld [vmem:[#allocation6 + $0x164] sm:$0xf]
    %v169 = vld [vmem:[#allocation6 + $0x168] sm:$0xf]
    %v170 = vld [vmem:[#allocation6 + $0x16c] sm:$0xf]
    %v171 = vld [vmem:[#allocation6 + $0x170] sm:$0xf]
    %v172 = vld [vmem:[#allocation6 + $0x174] sm:$0xf]
    %v173 = vld [vmem:[#allocation6 + $0x178] sm:$0xf]
    %v174 = vld [vmem:[#allocation6 + $0x17c] sm:$0xf]
    %v181 = vunpack.c.l.b16 %v73
    %v182 = vunpack.c.h.b16 %v73
    %v183 = vunpack.c.l.b16 %v74
    %v184 = vunpack.c.h.b16 %v74
    %v185 = vunpack.c.l.b16 %v75
    %v186 = vunpack.c.h.b16 %v75
    %v187 = vunpack.c.l.b16 %v76
    %v188 = vunpack.c.h.b16 %v76
    %v189 = vunpack.c.l.b16 %v77
    %v190 = vunpack.c.h.b16 %v77
    %v191 = vunpack.c.l.b16 %v78
    %v192 = vunpack.c.h.b16 %v78
    %v193 = vpack.c.b16 %v187, %v181
    %v194 = vpack.c.b16 %v188, %v182
    %v195 = vpack.c.b16 %v189, %v183
    %v196 = vpack.c.b16 %v190, %v184
    %v197 = vpack.c.b16 %v191, %v185
    %v198 = vpack.c.b16 %v192, %v186
    %v301 = vunpack.c.l.b16 %v79
    %v302 = vunpack.c.l.b16 %v80
    %v303 = vunpack.c.l.b16 %v81
    %v304 = vunpack.c.l.b16 %v82
    %v305 = vunpack.c.l.b16 %v83
    %v306 = vunpack.c.l.b16 %v84
    %v307 = vunpack.c.l.b16 %v85
    %v308 = vunpack.c.l.b16 %v86
    %v309 = vunpack.c.l.b16 %v87
    %v310 = vunpack.c.l.b16 %v88
    %v311 = vunpack.c.l.b16 %v89
    %v312 = vunpack.c.l.b16 %v90
    %v313 = vunpack.c.l.b16 %v91
    %v314 = vunpack.c.l.b16 %v92
    %v315 = vunpack.c.l.b16 %v93
    %v316 = vunpack.c.l.b16 %v94
    %v317 = vunpack.c.l.b16 %v95
    %v318 = vunpack.c.l.b16 %v96
    %v319 = vunpack.c.l.b16 %v97
    %v320 = vunpack.c.l.b16 %v98
    %v321 = vunpack.c.l.b16 %v99
    %v322 = vunpack.c.l.b16 %v100
    %v323 = vunpack.c.l.b16 %v101
    %v324 = vunpack.c.l.b16 %v102
    %v325 = vunpack.c.l.b16 %v103
    %v326 = vunpack.c.l.b16 %v104
    %v327 = vunpack.c.l.b16 %v105
    %v328 = vunpack.c.l.b16 %v106
    %v329 = vunpack.c.l.b16 %v107
    %v330 = vunpack.c.l.b16 %v108
    %v331 = vunpack.c.l.b16 %v109
    %v332 = vunpack.c.l.b16 %v110
    %v333 = vunpack.c.l.b16 %v111
    %v334 = vunpack.c.l.b16 %v112
    %v335 = vunpack.c.l.b16 %v113
    %v336 = vunpack.c.l.b16 %v114
    %v337 = vunpack.c.l.b16 %v115
    %v338 = vunpack.c.l.b16 %v116
    %v339 = vunpack.c.l.b16 %v117
    %v340 = vunpack.c.l.b16 %v118
    %v341 = vunpack.c.l.b16 %v119
    %v342 = vunpack.c.l.b16 %v120
    %v343 = vunpack.c.l.b16 %v121
    %v344 = vunpack.c.l.b16 %v122
    %v345 = vunpack.c.l.b16 %v123
    %v346 = vunpack.c.l.b16 %v124
    %v347 = vunpack.c.l.b16 %v125
    %v348 = vunpack.c.l.b16 %v126
    %v349 = vunpack.c.l.b16 %v127
    %v350 = vunpack.c.l.b16 %v128
    %v351 = vunpack.c.l.b16 %v129
    %v352 = vunpack.c.l.b16 %v130
    %v353 = vunpack.c.l.b16 %v131
    %v354 = vunpack.c.l.b16 %v132
    %v355 = vunpack.c.l.b16 %v133
    %v356 = vunpack.c.l.b16 %v134
    %v357 = vunpack.c.l.b16 %v135
    %v358 = vunpack.c.l.b16 %v136
    %v359 = vunpack.c.l.b16 %v137
    %v360 = vunpack.c.l.b16 %v138
    %v361 = vunpack.c.l.b16 %v139
    %v362 = vunpack.c.l.b16 %v140
    %v363 = vunpack.c.l.b16 %v141
    %v364 = vunpack.c.l.b16 %v142
    %v365 = vunpack.c.l.b16 %v143
    %v366 = vunpack.c.l.b16 %v144
    %v367 = vunpack.c.l.b16 %v145
    %v368 = vunpack.c.l.b16 %v146
    %v369 = vunpack.c.l.b16 %v147
    %v370 = vunpack.c.l.b16 %v148
    %v371 = vunpack.c.l.b16 %v149
    %v372 = vunpack.c.l.b16 %v150
    %v373 = vunpack.c.l.b16 %v151
    %v374 = vunpack.c.l.b16 %v152
    %v375 = vunpack.c.l.b16 %v153
    %v376 = vunpack.c.l.b16 %v154
    %v377 = vunpack.c.l.b16 %v155
    %v378 = vunpack.c.l.b16 %v156
    %v379 = vunpack.c.l.b16 %v157
    %v380 = vunpack.c.l.b16 %v158
    %v381 = vunpack.c.l.b16 %v159
    %v382 = vunpack.c.l.b16 %v160
    %v383 = vunpack.c.l.b16 %v161
    %v384 = vunpack.c.l.b16 %v162
    %v385 = vunpack.c.l.b16 %v163
    %v386 = vunpack.c.l.b16 %v164
    %v387 = vunpack.c.l.b16 %v165
    %v388 = vunpack.c.l.b16 %v166
    %v389 = vunpack.c.l.b16 %v167
    %v390 = vunpack.c.l.b16 %v168
    %v391 = vunpack.c.l.b16 %v169
    %v392 = vunpack.c.l.b16 %v170
    %v393 = vunpack.c.l.b16 %v171
    %v394 = vunpack.c.l.b16 %v172
    %v395 = vunpack.c.l.b16 %v173
    %v396 = vunpack.c.l.b16 %v174
    %v397 = vpack.c.b16 %v302, %v301
    %v398 = vpack.c.b16 %v304, %v303
    %v399 = vpack.c.b16 %v306, %v305
    %v400 = vpack.c.b16 %v308, %v307
    %v401 = vpack.c.b16 %v310, %v309
    %v402 = vpack.c.b16 %v312, %v311
    %v403 = vpack.c.b16 %v314, %v313
    %v404 = vpack.c.b16 %v316, %v315
    %v405 = vpack.c.b16 %v318, %v317
    %v406 = vpack.c.b16 %v320, %v319
    %v407 = vpack.c.b16 %v322, %v321
    %v408 = vpack.c.b16 %v324, %v323
    %v409 = vpack.c.b16 %v326, %v325
    %v410 = vpack.c.b16 %v328, %v327
    %v411 = vpack.c.b16 %v330, %v329
    %v412 = vpack.c.b16 %v332, %v331
    %v413 = vpack.c.b16 %v334, %v333
    %v414 = vpack.c.b16 %v336, %v335
    %v415 = vpack.c.b16 %v338, %v337
    %v416 = vpack.c.b16 %v340, %v339
    %v417 = vpack.c.b16 %v342, %v341
    %v418 = vpack.c.b16 %v344, %v343
    %v419 = vpack.c.b16 %v346, %v345
    %v420 = vpack.c.b16 %v348, %v347
    %v421 = vpack.c.b16 %v350, %v349
    %v422 = vpack.c.b16 %v352, %v351
    %v423 = vpack.c.b16 %v354, %v353
    %v424 = vpack.c.b16 %v356, %v355
    %v425 = vpack.c.b16 %v358, %v357
    %v426 = vpack.c.b16 %v360, %v359
    %v427 = vpack.c.b16 %v362, %v361
    %v428 = vpack.c.b16 %v364, %v363
    %v429 = vpack.c.b16 %v366, %v365
    %v430 = vpack.c.b16 %v368, %v367
    %v431 = vpack.c.b16 %v370, %v369
    %v432 = vpack.c.b16 %v372, %v371
    %v433 = vpack.c.b16 %v374, %v373
    %v434 = vpack.c.b16 %v376, %v375
    %v435 = vpack.c.b16 %v378, %v377
    %v436 = vpack.c.b16 %v380, %v379
    %v437 = vpack.c.b16 %v382, %v381
    %v438 = vpack.c.b16 %v384, %v383
    %v439 = vpack.c.b16 %v386, %v385
    %v440 = vpack.c.b16 %v388, %v387
    %v441 = vpack.c.b16 %v390, %v389
    %v442 = vpack.c.b16 %v392, %v391
    %v443 = vpack.c.b16 %v394, %v393
    %v444 = vpack.c.b16 %v396, %v395
    %493 = vmatpush.bf16.msra.mxu0 %v404
    %494 = vmatpush.bf16.msra.mxu0 %v403
    %495 = vmatpush.bf16.msra.mxu0 %v402
    %496 = vmatpush.bf16.msra.mxu0 %v401
    %497 = vmatpush.bf16.msra.mxu0 %v400
    %498 = vmatpush.bf16.msra.mxu0 %v399
    %499 = vmatpush.bf16.msra.mxu0 %v398
    %500 = vmatpush.bf16.msra.mxu0 %v397
    %501 = vmatmul.bf16.gmra.mxu0 %v193
    %v502 = vpop.f32.mrf.mxu0
    %v503 = vadd.f32 0.0, %v502
    %v504 = vpop.f32.mrf.mxu0
    %v505 = vadd.f32 0.0, %v504
    %506 = vdwg.mxu0
    %507 = vmatpush.bf16.msra.mxu0 %v412
    %508 = vmatpush.bf16.msra.mxu0 %v411
    %509 = vmatpush.bf16.msra.mxu0 %v410
    %510 = vmatpush.bf16.msra.mxu0 %v409
    %511 = vmatpush.bf16.msra.mxu0 %v408
    %512 = vmatpush.bf16.msra.mxu0 %v407
    %513 = vmatpush.bf16.msra.mxu0 %v406
    %514 = vmatpush.bf16.msra.mxu0 %v405
    %515 = vmatmul.bf16.gmra.mxu0 %v194
    %v516 = vpop.f32.mrf.mxu0
    %v517 = vadd.f32 %v503, %v516
    %v518 = vpop.f32.mrf.mxu0
    %v519 = vadd.f32 %v505, %v518
    %520 = vdwg.mxu0
    %521 = vmatpush.bf16.msra.mxu0 %v420
    %522 = vmatpush.bf16.msra.mxu0 %v419
    %523 = vmatpush.bf16.msra.mxu0 %v418
    %524 = vmatpush.bf16.msra.mxu0 %v417
    %525 = vmatpush.bf16.msra.mxu0 %v416
    %526 = vmatpush.bf16.msra.mxu0 %v415
    %527 = vmatpush.bf16.msra.mxu0 %v414
    %528 = vmatpush.bf16.msra.mxu0 %v413
    %529 = vmatmul.bf16.gmra.mxu0 %v195
    %v530 = vpop.f32.mrf.mxu0
    %v531 = vadd.f32 %v517, %v530
    %v532 = vpop.f32.mrf.mxu0
    %v533 = vadd.f32 %v519, %v532
    %534 = vdwg.mxu0
    %535 = vmatpush.bf16.msra.mxu0 %v428
    %536 = vmatpush.bf16.msra.mxu0 %v427
    %537 = vmatpush.bf16.msra.mxu0 %v426
    %538 = vmatpush.bf16.msra.mxu0 %v425
    %539 = vmatpush.bf16.msra.mxu0 %v424
    %540 = vmatpush.bf16.msra.mxu0 %v423
    %541 = vmatpush.bf16.msra.mxu0 %v422
    %542 = vmatpush.bf16.msra.mxu0 %v421
    %543 = vmatmul.bf16.gmra.mxu0 %v196
    %v544 = vpop.f32.mrf.mxu0
    %v545 = vadd.f32 %v531, %v544
    %v546 = vpop.f32.mrf.mxu0
    %v547 = vadd.f32 %v533, %v546
    %548 = vdwg.mxu0
    %549 = vmatpush.bf16.msra.mxu0 %v436
    %550 = vmatpush.bf16.msra.mxu0 %v435
    %551 = vmatpush.bf16.msra.mxu0 %v434
    %552 = vmatpush.bf16.msra.mxu0 %v433
    %553 = vmatpush.bf16.msra.mxu0 %v432
    %554 = vmatpush.bf16.msra.mxu0 %v431
    %555 = vmatpush.bf16.msra.mxu0 %v430
    %556 = vmatpush.bf16.msra.mxu0 %v429
    %557 = vmatmul.bf16.gmra.mxu0 %v197
    %v558 = vpop.f32.mrf.mxu0
    %v559 = vadd.f32 %v545, %v558
    %v560 = vpop.f32.mrf.mxu0
    %v561 = vadd.f32 %v547, %v560
    %562 = vdwg.mxu0
    %563 = vmatpush.bf16.msra.mxu0 %v444
    %564 = vmatpush.bf16.msra.mxu0 %v443
    %565 = vmatpush.bf16.msra.mxu0 %v442
    %566 = vmatpush.bf16.msra.mxu0 %v441
    %567 = vmatpush.bf16.msra.mxu0 %v440
    %568 = vmatpush.bf16.msra.mxu0 %v439
    %569 = vmatpush.bf16.msra.mxu0 %v438
    %570 = vmatpush.bf16.msra.mxu0 %v437
    %571 = vmatmul.bf16.gmra.mxu0 %v198
    %v572 = vpop.f32.mrf.mxu0
    %v573 = vadd.f32 %v559, %v572
    %v574 = vpop.f32.mrf.mxu0
    %v575 = vadd.f32 %v561, %v574
    %576 = vdwg.mxu0
    %v577 = vadd.f32 %v71, %v573
    %v578 = vadd.f32 %v72, %v575
    %579 = vst [vmem:[#allocation2] sm:$0xff] %v577
    %580 = vst [vmem:[#allocation2 + $0x8] sm:$0xff] %v578
    // Predicated region
    $region34: #{tpu_custom_call.1} parent=1 // pred_check
      %p581 = pneg %p65
    $region35: #{tpu_custom_call.1} parent=1 // pred_check_branch
      %583 = sbr.rel (%p581) target = $region37
    $region36: #{tpu_custom_call.1} parent=1 // pred_region
      %v584 = vld [vmem:[#allocation2] sm:$0xff]
      %v585 = vld [vmem:[#allocation2 + $0x8] sm:$0xff]
      %v586 = vld [vmem:[#allocation8] sm:$0xff]
      %v587 = vld [vmem:[#allocation8 + $0x8] sm:$0xff]
      %v588 = vld [vmem:[#allocation8 + $0x10] sm:$0xff]
      %v589 = vld [vmem:[#allocation8 + $0x18] sm:$0xff]
      %v590 = vld [vmem:[#allocation8 + $0x20] sm:$0xff]
      %v591 = vld [vmem:[#allocation8 + $0x28] sm:$0xff]
      %v592 = vld [vmem:[#allocation8 + $0x30] sm:$0xff]
      %v593 = vld [vmem:[#allocation8 + $0x38] sm:$0xff]
      %v594 = vld [vmem:[#allocation8 + $0x40] sm:$0xff]
      %v595 = vld [vmem:[#allocation8 + $0x48] sm:$0xff]
      %v596 = vld [vmem:[#allocation8 + $0x50] sm:$0xff]
      %v597 = vld [vmem:[#allocation8 + $0x58] sm:$0xff]
      %v598 = vld [vmem:[#allocation8 + $0x60] sm:$0xff]
      %v599 = vld [vmem:[#allocation8 + $0x68] sm:$0xff]
      %v600 = vld [vmem:[#allocation8 + $0x70] sm:$0xff]
      %v601 = vld [vmem:[#allocation8 + $0x78] sm:$0xff]
      %v602 = vld [vmem:[%s3] sm:$0x1]
      %v604 = vperm.slane %v602, 0
      %606 = vmatpush.msra.mxu0 %v601
      %607 = vmatpush.msra.mxu0 %v600
      %608 = vmatpush.msra.mxu0 %v599
      %609 = vmatpush.msra.mxu0 %v598
      %610 = vmatpush.msra.mxu0 %v597
      %611 = vmatpush.msra.mxu0 %v596
      %612 = vmatpush.msra.mxu0 %v595
      %613 = vmatpush.msra.mxu0 %v594
      %614 = vmatpush.msra.mxu0 %v593
      %615 = vmatpush.msra.mxu0 %v592
      %616 = vmatpush.msra.mxu0 %v591
      %617 = vmatpush.msra.mxu0 %v590
      %618 = vmatpush.msra.mxu0 %v589
      %619 = vmatpush.msra.mxu0 %v588
      %620 = vmatpush.msra.mxu0 %v587
      %621 = vmatpush.msra.mxu0 %v586
      %622 = vmatmul.f32.gmra.mxu0 %v584
      %v623 = vpop.f32.mrf.mxu0
      %v624 = vadd.f32 %v604, %v623
      %625 = vmatmul.f32.gmra.mxu0 %v585
      %v626 = vpop.f32.mrf.mxu0
      %v627 = vadd.f32 %v604, %v626
      %628 = vdwg.mxu0
      %629 = vst [vmem:[#allocation9] sm:$0xff] %v624
      %630 = vst [vmem:[#allocation9 + $0x8] sm:$0xff] %v627
    $region37: #{tpu_custom_call.1} parent=1 // pred_fallthru
      _
    // Predicated region
    $region38: #{tpu_custom_call.1} parent=1 // pred_check
      _
    $region39: #{tpu_custom_call.1} parent=1 // pred_check_branch
      %632 = sbr.rel (0) target = $region41
    $region40: #{tpu_custom_call.1} parent=1 // pred_region
      %634 = vsyncadd [#allocation5], 0
      %s635 = sshll.u32 [#allocation9], 4
      %s636 = int_to_ptr.vmem [resolvable:$true] %s635
      %s637 = sshll.u32 %s4, 4
      %s638 = int_to_ptr.hbm [resolvable:$true] %s637
      %643 = dma.vmem_to_hbm [thread:$0]  %s636, 256, %s638, [#allocation5], 128, 128, 8
    $region41: #{tpu_custom_call.1} parent=1 // pred_fallthru
      _
    // Predicated region
    $region42: #{tpu_custom_call.1} parent=1 // pred_check
      _
    $region43: #{tpu_custom_call.1} parent=1 // pred_check_branch
      %645 = sbr.rel (0) target = $region45
    $region44: #{tpu_custom_call.1} parent=1 // pred_region
      %647 = dma.done [#allocation5], 256
    $region45: #{tpu_custom_call.1} parent=1 // pred_fallthru
      _
    %648 = vsyncpa [#allocation4], 1
    %649 = vsyncpa [#allocation7], 1
    %650 = vsyncpa [#allocation5], 1

</llo_original>
